<compile_context>
chip_gen: v5e
topology: v5e:2x2
jax: 0.10.0
libtpu: 0.0.40
codegen_flags: <defaults>
</compile_context>

<pallas_src>
import jax
import jax.numpy as jnp
from jax.experimental import pallas as pl
from jax.experimental.pallas import tpu as pltpu


def _round_up(n: int, m: int) -> int:
    return ((n + m - 1) // m) * m


def _value_net_kernel(xT_ref, w1_ref, b1_ref, w2_ref, b2_ref, w3_ref, b3_ref,
                      out_ref):
    """Fused 3-layer MLP in batch-on-lanes layout.

    xT_ref : (input_dim, TILE_B) bf16      (batch on lane axis)
    w1_ref : (h0, input_dim)     bf16      b1_ref : (h0, 1) f32
    w2_ref : (h1, h0)            bf16      b2_ref : (h1, 1) f32
    w3_ref : (h1, 1)             f32       b3_ref : (1, 1)  f32 (SMEM)
    out_ref: (1, TILE_B)         f32
    """
    x = xT_ref[...]                                            # bf16 (in, TB)

    # Layer 1: h = relu(W1 @ x + b1)   -> (h0, TILE_B), f32 accumulation.
    h = jnp.dot(w1_ref[...], x, preferred_element_type=jnp.float32)
    h = jnp.maximum(h + b1_ref[...], 0.0)

    # Layer 2: h = relu(W2 @ h + b2)   -> (h1, TILE_B).
    h = jnp.dot(w2_ref[...], h.astype(jnp.bfloat16),
                preferred_element_type=jnp.float32)
    h = jnp.maximum(h + b2_ref[...], 0.0)

    # Value head (out_features = 1): VPU multiply + sublane reduction, f32.
    v = jnp.sum(h * w3_ref[...], axis=0, keepdims=True)        # (1, TILE_B)
    out_ref[...] = (v + b3_ref[0, 0]).astype(out_ref.dtype)


def value_network_forward(x, params, tile_b: int = 512):
    """Fused value-network forward pass on TPU via Pallas.

    x      : (B, input_dim) float32 observations
    params : dict with
               w1 (h0, input_dim), b1 (h0, 1),
               w2 (h1, h0),        b2 (h1, 1),
               w3 (h1, 1),         b3 (1, 1)
    returns: (B, 1) float32 value estimates
    """
    B, in_dim = x.shape
    h0 = params["w1"].shape[0]
    h1 = params["w2"].shape[0]

    # Effective batch tile: multiple of 128 lanes, no bigger than needed.
    tb = max(128, min(_round_up(tile_b, 128), _round_up(B, 128)))
    Bp = _round_up(B, tb)
    n_tiles = Bp // tb

    # Pad the batch to a multiple of the tile and transpose so batch is on the
    # lane (last) axis. Cast MXU operands to bf16 once, in the wrapper.
    x_pad = jnp.pad(x, ((0, Bp - B), (0, 0)))
    xT = x_pad.T.astype(jnp.bfloat16)                           # (in_dim, Bp)
    w1 = params["w1"].astype(jnp.bfloat16)
    w2 = params["w2"].astype(jnp.bfloat16)

    out = pl.pallas_call(
        _value_net_kernel,
        out_shape=jax.ShapeDtypeStruct((1, Bp), jnp.float32),
        grid=(n_tiles,),
        in_specs=[
            pl.BlockSpec((in_dim, tb), lambda i: (0, i)),       # x tile
            pl.BlockSpec((h0, in_dim), lambda i: (0, 0)),       # W1 (resident)
            pl.BlockSpec((h0, 1), lambda i: (0, 0)),            # b1 (resident)
            pl.BlockSpec((h1, h0), lambda i: (0, 0)),           # W2 (resident)
            pl.BlockSpec((h1, 1), lambda i: (0, 0)),            # b2 (resident)
            pl.BlockSpec((h1, 1), lambda i: (0, 0)),            # w3 (resident)
            pl.BlockSpec(memory_space=pltpu.MemorySpace.SMEM),  # b3 scalar
        ],
        out_specs=pl.BlockSpec((1, tb), lambda i: (0, i)),
        compiler_params=pltpu.CompilerParams(
            dimension_semantics=("parallel",)),
    )(xT, w1, params["b1"], w2, params["b2"], params["w3"], params["b3"])

    # Drop batch padding and restore (B, 1).
    return out[0, :B].reshape(B, 1)


def init_params(key, input_dim, hidden_layers):
    """Init matching PyTorch nn.Linear defaults (uniform ±1/sqrt(fan_in)).

    Weights are stored in PyTorch (out, in) orientation — exactly what the
    batch-on-lanes kernel wants (W @ x). The head weight is stored as a
    (h_last, 1) column for the VPU reduction.
    """
    dims = [input_dim] + list(hidden_layers) + [1]
    params = {}
    for i in range(len(dims) - 1):
        fan_in, fan_out = dims[i], dims[i + 1]
        key, kw, kb = jax.random.split(key, 3)
        bound = 1.0 / jnp.sqrt(jnp.float32(fan_in))
        w = jax.random.uniform(kw, (fan_out, fan_in), jnp.float32, -bound, bound)
        b = jax.random.uniform(kb, (fan_out, 1), jnp.float32, -bound, bound)
        if i == len(dims) - 2:                                  # value head
            params[f"w{i + 1}"] = w.T                           # (fan_in, 1)
            params[f"b{i + 1}"] = b                             # (1, 1)
        else:
            params[f"w{i + 1}"] = w                             # (out, in)
            params[f"b{i + 1}"] = b                             # (out, 1)
    return params


def value_network_reference(x, params):
    """Pure-JAX f32 reference for correctness checking."""
    h = jnp.maximum(x @ params["w1"].T + params["b1"].T, 0.0)
    h = jnp.maximum(h @ params["w2"].T + params["b2"].T, 0.0)
    return h @ params["w3"] + params["b3"]


if __name__ == "__main__":
    # Small shapes consistent with the module: input_dim=(16,), hidden=[32, 32]
    batch = 8
    input_dim = 16
    hidden_layers = [32, 32]

    key = jax.random.PRNGKey(0)
    key, kx = jax.random.split(key)
    x = jax.random.normal(kx, (batch, input_dim), jnp.float32)
    params = init_params(key, input_dim, hidden_layers)

    value = value_network_forward(x, params)
    jax.block_until_ready(value)

    ref = value_network_reference(x, params)
    assert value.shape == (batch, 1)
    # bf16 MXU operands with f32 accumulation vs. pure-f32 reference:
    # relative error ~0.5-1%, so compare at a correspondingly relaxed tolerance.
    assert jnp.allclose(value, ref, atol=2e-2, rtol=2e-2), "mismatch vs reference"

    print("KERNEL_OK")
</pallas_src>

<mosaic_0001>
module attributes {stable_mosaic.version = 11 : i64} {
  func.func @_value_net_kernel(%arg0: i32, %arg1: memref<16x128xbf16, #tpu.memory_space<vmem>>, %arg2: memref<32x16xbf16, #tpu.memory_space<vmem>>, %arg3: memref<32x1xf32, #tpu.memory_space<vmem>>, %arg4: memref<32x32xbf16, #tpu.memory_space<vmem>>, %arg5: memref<32x1xf32, #tpu.memory_space<vmem>>, %arg6: memref<32x1xf32, #tpu.memory_space<vmem>>, %arg7: memref<1x1xf32, #tpu.memory_space<smem>>, %arg8: memref<1x128xf32, #tpu.memory_space<vmem>>) attributes {dimension_semantics = [#tpu.dimension_semantics<parallel>], iteration_bounds = array<i64: 1>, scalar_prefetch = 0 : i64, scratch_operands = 0 : i64, tpu.core_type = #tpu.core_type<tc>, window_params = [{transform_indices = @transform_0, window_bounds = array<i64: 16, 128>}, {pipeline_mode = #tpu.pipeline_mode<synchronous>, transform_indices = @transform_1, window_bounds = array<i64: 32, 16>}, {pipeline_mode = #tpu.pipeline_mode<synchronous>, transform_indices = @transform_2, window_bounds = array<i64: 32, 1>}, {pipeline_mode = #tpu.pipeline_mode<synchronous>, transform_indices = @transform_3, window_bounds = array<i64: 32, 32>}, {pipeline_mode = #tpu.pipeline_mode<synchronous>, transform_indices = @transform_4, window_bounds = array<i64: 32, 1>}, {pipeline_mode = #tpu.pipeline_mode<synchronous>, transform_indices = @transform_5, window_bounds = array<i64: 32, 1>}, {transform_indices = @transform_6, window_bounds = array<i64: 1, 1>}, {transform_indices = @transform_7, window_bounds = array<i64: 1, 128>}]} {
    %c0 = arith.constant 0 : index
    %c0_0 = arith.constant 0 : index
    %0 = vector.load %arg1[%c0, %c0_0] : memref<16x128xbf16, #tpu.memory_space<vmem>>, vector<16x128xbf16>
    %c0_1 = arith.constant 0 : index
    %c0_2 = arith.constant 0 : index
    %1 = vector.load %arg2[%c0_1, %c0_2] : memref<32x16xbf16, #tpu.memory_space<vmem>>, vector<32x16xbf16>
    %cst = arith.constant dense<0.000000e+00> : vector<32x128xf32>
    %2 = tpu.matmul %1, %0, %cst {dimension_numbers = #tpu.dot_dimension_numbers<[1], [0], [0], [1], [0, 0, 1, 1], [], []>} : vector<32x16xbf16>, vector<16x128xbf16>, vector<32x128xf32> -> vector<32x128xf32>
    %c0_3 = arith.constant 0 : index
    %c0_4 = arith.constant 0 : index
    %3 = vector.load %arg3[%c0_3, %c0_4] : memref<32x1xf32, #tpu.memory_space<vmem>>, vector<32x1xf32>
    %4 = vector.broadcast %3 : vector<32x1xf32> to vector<32x128xf32>
    %5 = arith.addf %2, %4 : vector<32x128xf32>
    %cst_5 = arith.constant 0.000000e+00 : f32
    %6 = vector.broadcast %cst_5 : f32 to vector<32x128xf32>
    %7 = arith.maximumf %5, %6 : vector<32x128xf32>
    %c0_6 = arith.constant 0 : index
    %c0_7 = arith.constant 0 : index
    %8 = vector.load %arg4[%c0_6, %c0_7] : memref<32x32xbf16, #tpu.memory_space<vmem>>, vector<32x32xbf16>
    %9 = arith.truncf %7 : vector<32x128xf32> to vector<32x128xbf16>
    %cst_8 = arith.constant dense<0.000000e+00> : vector<32x128xf32>
    %10 = tpu.matmul %8, %9, %cst_8 {dimension_numbers = #tpu.dot_dimension_numbers<[1], [0], [0], [1], [0, 0, 1, 1], [], []>} : vector<32x32xbf16>, vector<32x128xbf16>, vector<32x128xf32> -> vector<32x128xf32>
    %c0_9 = arith.constant 0 : index
    %c0_10 = arith.constant 0 : index
    %11 = vector.load %arg5[%c0_9, %c0_10] : memref<32x1xf32, #tpu.memory_space<vmem>>, vector<32x1xf32>
    %12 = vector.broadcast %11 : vector<32x1xf32> to vector<32x128xf32>
    %13 = arith.addf %10, %12 : vector<32x128xf32>
    %cst_11 = arith.constant 0.000000e+00 : f32
    %14 = vector.broadcast %cst_11 : f32 to vector<32x128xf32>
    %15 = arith.maximumf %13, %14 : vector<32x128xf32>
    %c0_12 = arith.constant 0 : index
    %c0_13 = arith.constant 0 : index
    %16 = vector.load %arg6[%c0_12, %c0_13] : memref<32x1xf32, #tpu.memory_space<vmem>>, vector<32x1xf32>
    %17 = vector.broadcast %16 : vector<32x1xf32> to vector<32x128xf32>
    %18 = arith.mulf %15, %17 : vector<32x128xf32>
    %cst_14 = arith.constant dense<0.000000e+00> : vector<128xf32>
    %19 = vector.multi_reduction <add>, %18, %cst_14 [0] : vector<32x128xf32> to vector<128xf32>
    %20 = vector.shape_cast %19 : vector<128xf32> to vector<1x128xf32>
    %c0_15 = arith.constant 0 : index
    %c0_16 = arith.constant 0 : index
    %21 = memref.load %arg7[%c0_15, %c0_16] : memref<1x1xf32, #tpu.memory_space<smem>>
    %22 = vector.broadcast %21 : f32 to vector<1x128xf32>
    %23 = arith.addf %20, %22 : vector<1x128xf32>
    %c0_17 = arith.constant 0 : index
    %c0_18 = arith.constant 0 : index
    %24 = vector.load %arg8[%c0_17, %c0_18] : memref<1x128xf32, #tpu.memory_space<vmem>>, vector<1x128xf32>
    tpu.vector_store %arg8[%c0_17, %c0_18], %23 {strides = array<i32>} : memref<1x128xf32, #tpu.memory_space<vmem>>, vector<1x128xf32>,
    return
  }
  func.func @transform_0(%arg0: i32) -> (i32, i32) {
    %c0_i32 = arith.constant 0 : i32
    %c0_i32_0 = arith.constant 0 : i32
    return %c0_i32, %arg0 : i32, i32
  }
  func.func @transform_1(%arg0: i32) -> (i32, i32) {
    %c0_i32 = arith.constant 0 : i32
    %c0_i32_0 = arith.constant 0 : i32
    %c0_i32_1 = arith.constant 0 : i32
    return %c0_i32, %c0_i32_0 : i32, i32
  }
  func.func @transform_2(%arg0: i32) -> (i32, i32) {
    %c0_i32 = arith.constant 0 : i32
    %c0_i32_0 = arith.constant 0 : i32
    %c0_i32_1 = arith.constant 0 : i32
    return %c0_i32, %c0_i32_0 : i32, i32
  }
  func.func @transform_3(%arg0: i32) -> (i32, i32) {
    %c0_i32 = arith.constant 0 : i32
    %c0_i32_0 = arith.constant 0 : i32
    %c0_i32_1 = arith.constant 0 : i32
    return %c0_i32, %c0_i32_0 : i32, i32
  }
  func.func @transform_4(%arg0: i32) -> (i32, i32) {
    %c0_i32 = arith.constant 0 : i32
    %c0_i32_0 = arith.constant 0 : i32
    %c0_i32_1 = arith.constant 0 : i32
    return %c0_i32, %c0_i32_0 : i32, i32
  }
  func.func @transform_5(%arg0: i32) -> (i32, i32) {
    %c0_i32 = arith.constant 0 : i32
    %c0_i32_0 = arith.constant 0 : i32
    %c0_i32_1 = arith.constant 0 : i32
    return %c0_i32, %c0_i32_0 : i32, i32
  }
  func.func @transform_6(%arg0: i32) -> (i32, i32) {
    %c0_i32 = arith.constant 0 : i32
    %c0_i32_0 = arith.constant 0 : i32
    %c0_i32_1 = arith.constant 0 : i32
    return %c0_i32, %c0_i32_0 : i32, i32
  }
  func.func @transform_7(%arg0: i32) -> (i32, i32) {
    %c0_i32 = arith.constant 0 : i32
    %c0_i32_0 = arith.constant 0 : i32
    return %c0_i32, %arg0 : i32, i32
  }
}

</mosaic_0001>

<llo_original>
// kernel: tpu_custom_call.1
$region0: #{tpu_custom_call.1}
  #allocation0 [shape = 'u32[]', space=smem, size = 0x4, offset = 0x4, fixed_abs, tag = 'smem constant byte address 0x4 - core index']
  #allocation1 [shape = 'u32[72,128]{1,0:T(1,128)}', space=vmem, size = 0x9000, scoped, tag = 'internal scratch']
  #allocation2 [shape = 'f32[1,1]{1,0:T(1,128)S(6)}', space=smem, size = 0x200, scoped, tag = 'scoped memory for tpu_custom_call.1']
  %s0 = inlined_call_operand.vmem [shape: bf16[16,128], index: 0, kind: input, shape index: {}]
  %s1 = inlined_call_operand.vmem [shape: bf16[32,16], index: 1, kind: input, shape index: {}]
  %s2 = inlined_call_operand.vmem [shape: f32[32,1], index: 2, kind: input, shape index: {}]
  %s3 = inlined_call_operand.vmem [shape: bf16[32,32], index: 3, kind: input, shape index: {}]
  %s4 = inlined_call_operand.vmem [shape: f32[32,1], index: 4, kind: input, shape index: {}]
  %s5 = inlined_call_operand.vmem [shape: f32[32,1], index: 5, kind: input, shape index: {}]
  %s6 = inlined_call_operand.<no memory space> [shape: f32[1,1], index: 6, kind: input, shape index: {}]
  %s7 = inlined_call_operand.hbm [shape: f32[1,128], index: 7, kind: output, shape index: {}]
  %s8 = sld [smem:[#allocation0]]
  $region38: #{tpu_custom_call.1} parent=0
    _
  %s10 = ssub.s32 1, %s8
  %s11 = scalar_select 0, %s10, %s8
  %12 = sst [smem:[#allocation2]] %s6
  $region1: #{tpu_custom_call.1} parent=0
    #allocation3 [shape = 'u8[512]{0}', space=vmem, size = 0x400, scoped, tag = 'output window, operand 0, single buffered']
    #allocation4 [shape = 's32[1]{0}', space=sflag, size = 0x4, scoped, tag = 'scoped memory for tpu_custom_call.1']
    %13 = vsyncpa [#allocation4], 0
    // Predicated region
    $region2: #{tpu_custom_call.1} parent=1 // pred_check
      _
    $region3: #{tpu_custom_call.1} parent=1 // pred_check_branch
      %15 = sbr.rel (0) target = $region5
    $region4: #{tpu_custom_call.1} parent=1 // pred_region
      _
    $region5: #{tpu_custom_call.1} parent=1 // pred_fallthru
      _
    // Predicated region
    $region6: #{tpu_custom_call.1} parent=1 // pred_check
      _
    $region7: #{tpu_custom_call.1} parent=1 // pred_check_branch
      %17 = sbr.rel (0) target = $region9
    $region8: #{tpu_custom_call.1} parent=1 // pred_region
      _
    $region9: #{tpu_custom_call.1} parent=1 // pred_fallthru
      _
    // Predicated region
    $region10: #{tpu_custom_call.1} parent=1 // pred_check
      _
    $region11: #{tpu_custom_call.1} parent=1 // pred_check_branch
      %19 = sbr.rel (0) target = $region13
    $region12: #{tpu_custom_call.1} parent=1 // pred_region
      _
    $region13: #{tpu_custom_call.1} parent=1 // pred_fallthru
      _
    // Predicated region
    $region14: #{tpu_custom_call.1} parent=1 // pred_check
      _
    $region15: #{tpu_custom_call.1} parent=1 // pred_check_branch
      %21 = sbr.rel (0) target = $region17
    $region16: #{tpu_custom_call.1} parent=1 // pred_region
      _
    $region17: #{tpu_custom_call.1} parent=1 // pred_fallthru
      _
    // Predicated region
    $region18: #{tpu_custom_call.1} parent=1 // pred_check
      _
    $region19: #{tpu_custom_call.1} parent=1 // pred_check_branch
      %23 = sbr.rel (0) target = $region21
    $region20: #{tpu_custom_call.1} parent=1 // pred_region
      _
    $region21: #{tpu_custom_call.1} parent=1 // pred_fallthru
      _
    // Predicated region
    $region22: #{tpu_custom_call.1} parent=1 // pred_check
      _
    $region23: #{tpu_custom_call.1} parent=1 // pred_check_branch
      %25 = sbr.rel (0) target = $region25
    $region24: #{tpu_custom_call.1} parent=1 // pred_region
      _
    $region25: #{tpu_custom_call.1} parent=1 // pred_fallthru
      _
    // Predicated region
    $region26: #{tpu_custom_call.1} parent=1 // pred_check
      _
    $region27: #{tpu_custom_call.1} parent=1 // pred_check_branch
      %27 = sbr.rel (0) target = $region29
    $region28: #{tpu_custom_call.1} parent=1 // pred_region
      _
    $region29: #{tpu_custom_call.1} parent=1 // pred_fallthru
      _
    %v29 = vld [vmem:[%s0] sm:$0xf]
    %v30 = vld [vmem:[%s0 + $0x4] sm:$0xf]
    %v31 = vld [vmem:[%s1] sm:$0xf]
    %v32 = vld [vmem:[%s1 + $0x4] sm:$0xf]
    %v33 = vld [vmem:[%s1 + $0x8] sm:$0xf]
    %v34 = vld [vmem:[%s1 + $0xc] sm:$0xf]
    %v35 = vld [vmem:[%s2] sm:$0xff]
    %v36 = vld [vmem:[%s2 + $0x8] sm:$0xff]
    %v37 = vld [vmem:[%s2 + $0x10] sm:$0xff]
    %v38 = vld [vmem:[%s2 + $0x18] sm:$0xff]
    %40 = vset.pattern.permute.xlu0 0
    %41 = vperm.xlu0 %40, %v35
    %v42 = vpop.permute.xlu0 %41
    %45 = vset.pattern.permute.xlu0 0
    %46 = vperm.xlu0 %45, %v36
    %v47 = vpop.permute.xlu0 %46
    %50 = vset.pattern.permute.xlu0 0
    %51 = vperm.xlu0 %50, %v37
    %v52 = vpop.permute.xlu0 %51
    %55 = vset.pattern.permute.xlu0 0
    %56 = vperm.xlu0 %55, %v38
    %v57 = vpop.permute.xlu0 %56
    %v63 = vunpack.c.l.b16 %v31
    %v64 = vunpack.c.l.b16 %v32
    %v65 = vunpack.c.l.b16 %v33
    %v66 = vunpack.c.l.b16 %v34
    %v67 = vpack.c.b16 %v64, %v63
    %v68 = vpack.c.b16 %v66, %v65
    %v71 = vunpack.c.l.b16 %v29
    %v72 = vunpack.c.l.b16 %v30
    %v73 = vpack.c.b16 %v72, %v71
    %vm75 = vcmask 130048
    %v77 = vsel %vm75, %v67, 0
    %v80 = vsel %vm75, %v68, 0
    %82 = vmatpush.bf16.msra.mxu0 0
    %83 = vmatpush.bf16.msra.mxu0 0
    %84 = vmatpush.bf16.msra.mxu0 0
    %85 = vmatpush.bf16.msra.mxu0 0
    %86 = vmatpush.bf16.msra.mxu0 0
    %87 = vmatpush.bf16.msra.mxu0 0
    %88 = vmatpush.bf16.msra.mxu0 0
    %89 = vmatpush.bf16.msra.mxu0 %v73
    %90 = vmatmul.bf16.gmra.mxu0 %v77
    %v91 = vpop.f32.mrf.mxu0
    %v92 = vadd.f32 %v42, %v91
    %v93 = vpop.f32.mrf.mxu0
    %v94 = vadd.f32 %v47, %v93
    %95 = vmatmul.bf16.gmra.mxu0 %v80
    %v96 = vpop.f32.mrf.mxu0
    %v97 = vadd.f32 %v52, %v96
    %v98 = vpop.f32.mrf.mxu0
    %v99 = vadd.f32 %v57, %v98
    %100 = vdwg.mxu0
    %v101 = vmax.f32 %v92, 0.0
    %v102 = vmax.f32 %v94, 0.0
    %v103 = vmax.f32 %v97, 0.0
    %v104 = vmax.f32 %v99, 0.0
    %v105 = vld [vmem:[%s3] sm:$0xf]
    %v106 = vld [vmem:[%s3 + $0x4] sm:$0xf]
    %v107 = vld [vmem:[%s3 + $0x8] sm:$0xf]
    %v108 = vld [vmem:[%s3 + $0xc] sm:$0xf]
    %v109 = vpack.c.bf16 %v102, %v101
    %v110 = vpack.c.bf16 %v104, %v103
    %v111 = vld [vmem:[%s4] sm:$0xff]
    %v112 = vld [vmem:[%s4 + $0x8] sm:$0xff]
    %v113 = vld [vmem:[%s4 + $0x10] sm:$0xff]
    %v114 = vld [vmem:[%s4 + $0x18] sm:$0xff]
    %116 = vset.pattern.permute.xlu0 0
    %117 = vperm.xlu0 %116, %v111
    %v118 = vpop.permute.xlu0 %117
    %121 = vset.pattern.permute.xlu0 0
    %122 = vperm.xlu0 %121, %v112
    %v123 = vpop.permute.xlu0 %122
    %126 = vset.pattern.permute.xlu0 0
    %127 = vperm.xlu0 %126, %v113
    %v128 = vpop.permute.xlu0 %127
    %131 = vset.pattern.permute.xlu0 0
    %132 = vperm.xlu0 %131, %v114
    %v133 = vpop.permute.xlu0 %132
    %v139 = vunpack.c.l.b16 %v105
    %v140 = vunpack.c.l.b16 %v106
    %v141 = vunpack.c.l.b16 %v107
    %v142 = vunpack.c.l.b16 %v108
    %v143 = vpack.c.b16 %v140, %v139
    %v144 = vpack.c.b16 %v142, %v141
    %vm145 = vcmask 261120
    %v147 = vsel %vm145, %v143, 0
    %v150 = vsel %vm145, %v144, 0
    %152 = vmatpush.bf16.msra.mxu0 0
    %153 = vmatpush.bf16.msra.mxu0 0
    %154 = vmatpush.bf16.msra.mxu0 0
    %155 = vmatpush.bf16.msra.mxu0 0
    %156 = vmatpush.bf16.msra.mxu0 0
    %157 = vmatpush.bf16.msra.mxu0 0
    %158 = vmatpush.bf16.msra.mxu0 %v110
    %159 = vmatpush.bf16.msra.mxu0 %v109
    %160 = vmatmul.bf16.gmra.mxu0 %v147
    %v161 = vpop.f32.mrf.mxu0
    %v162 = vadd.f32 %v118, %v161
    %v163 = vpop.f32.mrf.mxu0
    %v164 = vadd.f32 %v123, %v163
    %165 = vmatmul.bf16.gmra.mxu0 %v150
    %v166 = vpop.f32.mrf.mxu0
    %v167 = vadd.f32 %v128, %v166
    %v168 = vpop.f32.mrf.mxu0
    %v169 = vadd.f32 %v133, %v168
    %170 = vdwg.mxu0
    %v171 = vmax.f32 %v162, 0.0
    %v172 = vmax.f32 %v164, 0.0
    %v173 = vmax.f32 %v167, 0.0
    %v174 = vmax.f32 %v169, 0.0
    %v175 = vld [vmem:[%s5] sm:$0xff]
    %v176 = vld [vmem:[%s5 + $0x8] sm:$0xff]
    %v177 = vld [vmem:[%s5 + $0x10] sm:$0xff]
    %v178 = vld [vmem:[%s5 + $0x18] sm:$0xff]
    %180 = vset.pattern.permute.xlu0 0
    %181 = vperm.xlu0 %180, %v175
    %v182 = vpop.permute.xlu0 %181
    %185 = vset.pattern.permute.xlu0 0
    %186 = vperm.xlu0 %185, %v176
    %v187 = vpop.permute.xlu0 %186
    %190 = vset.pattern.permute.xlu0 0
    %191 = vperm.xlu0 %190, %v177
    %v192 = vpop.permute.xlu0 %191
    %195 = vset.pattern.permute.xlu0 0
    %196 = vperm.xlu0 %195, %v178
    %v197 = vpop.permute.xlu0 %196
    %v199 = vmul.f32 %v171, %v182
    %v200 = vmul.f32 %v172, %v187
    %v201 = vmul.f32 %v173, %v192
    %v202 = vmul.f32 %v174, %v197
    %v203 = vadd.f32 %v199, %v200
    %v204 = vadd.f32 %v203, %v201
    %v205 = vadd.f32 %v204, %v202
    %v206 = vrot.slane %v205, 4
    %v207 = vadd.f32 %v205, %v206
    %v208 = vrot.slane %v207, 2
    %v209 = vadd.f32 %v207, %v208
    %v210 = vrot.slane %v209, 1
    %v211 = vadd.f32 %v209, %v210
    %s212 = sld [smem:[#allocation2]]
    %v213 = vstv %s212
    %v214 = vadd.f32 %v211, %v213
    %215 = vst [vmem:[#allocation3] sm:$0x1] %v214
    // Predicated region
    $region30: #{tpu_custom_call.1} parent=1 // pred_check
      _
    $region31: #{tpu_custom_call.1} parent=1 // pred_check_branch
      %217 = sbr.rel (0) target = $region33
    $region32: #{tpu_custom_call.1} parent=1 // pred_region
      %219 = vsyncadd [#allocation4], 0
      %s221 = sshll.u32 [#allocation3], 4
      %s222 = int_to_ptr.vmem [resolvable:$true] %s221
      %s223 = sshll.u32 %s7, 4
      %s224 = int_to_ptr.hbm [resolvable:$true] %s223
      %226 = dma.vmem_to_hbm [thread:$0]  %s222, 16, %s224, [#allocation4]
    $region33: #{tpu_custom_call.1} parent=1 // pred_fallthru
      _
    // Predicated region
    $region34: #{tpu_custom_call.1} parent=1 // pred_check
      _
    $region35: #{tpu_custom_call.1} parent=1 // pred_check_branch
      %228 = sbr.rel (0) target = $region37
    $region36: #{tpu_custom_call.1} parent=1 // pred_region
      %230 = dma.done [#allocation4], 16
    $region37: #{tpu_custom_call.1} parent=1 // pred_fallthru
      _
    %231 = vsyncpa [#allocation4], 1

</llo_original>
